<compile_context>
chip_gen: v7x
topology: tpu7x:2x2x1
jax: 0.10.0
libtpu: 0.0.40
codegen_flags: <defaults>
</compile_context>

<pallas_src>
import jax
import jax.numpy as jnp
from jax.experimental import pallas as pl
from jax.experimental.pallas import tpu as pltpu


def _round_up(n, m):
    return ((n + m - 1) // m) * m


def laat_kernel(x_ref, w1_ref, w2_ref, w3t_ref, b3_ref, out_ref):
    # x_ref   : [Bt, N, S]   (one batch block)
    # w1_ref  : [S, Dp]      (first_linears.weight.T, d_a zero-padded to Dp)
    # w2_ref  : [Dp, Lp]     (second_linears.weight.T, padded)
    # w3t_ref : [S, Lp]      (third_linears.weight.T, padded)
    # b3_ref  : [1, Lp]      (third_linears.bias, padded)
    # out_ref : [Bt, Lp]
    Bt, N, S = x_ref.shape
    Lp = out_ref.shape[-1]

    # Flatten the batch block so both x-projections are one tall MXU matmul each.
    # (N is a multiple of 8 here, so this is a free sublane retiling.)
    x2d = x_ref[...].reshape(Bt * N, S)                               # [Bt*N, S]

    # weights = tanh(first_linears(x))   (f32 accumulate, f32 tanh)
    h = jnp.tanh(jnp.dot(x2d, w1_ref[...],
                         preferred_element_type=jnp.float32))         # [Bt*N, Dp]

    # att_weights = second_linears(weights)
    a = jnp.dot(h.astype(w2_ref.dtype), w2_ref[...],
                preferred_element_type=jnp.float32)                    # [Bt*N, Lp]

    # Fused third_linears: y[n, l] = <x[n, :], w3[l, :]>
    y = jnp.dot(x2d, w3t_ref[...],
                preferred_element_type=jnp.float32)                    # [Bt*N, Lp]

    # softmax over the sequence axis (PyTorch dim=1), per batch row / per label
    a3 = a.reshape(Bt, N, Lp)
    a3 = a3 - jnp.max(a3, axis=1, keepdims=True)
    e = jnp.exp(a3)
    p = e * pl.reciprocal(jnp.sum(e, axis=1, keepdims=True), approx=True)  # [Bt, N, Lp]

    # logits[b, l] = sum_n p[b, n, l] * y[b, n, l] + bias[l]
    #             == sum_s w3[l, s] * (att_weights.T @ x)[l, s] + bias[l]
    y3 = y.reshape(Bt, N, Lp)
    logits = jnp.sum(p * y3, axis=1) + b3_ref[...]                     # [Bt, Lp]
    out_ref[...] = logits.astype(out_ref.dtype)


def attention_layer_laat(x, w1, w2, w3, b3, *, cast_to=None):
    """LAAT attention layer forward.

    x:  [B, N, S]  input sequence features (S = hidden_size * 2)
    w1: [S, D_A]   first_linears.weight.T
    w2: [D_A, L]   second_linears.weight.T
    w3: [L, S]     third_linears.weight
    b3: [1, L]     third_linears.bias
    cast_to: optional matmul-operand dtype (e.g. jnp.bfloat16 for v6e/v7x);
             accumulation / tanh / softmax always run in f32.
    returns logits [B, L] (float32)
    """
    B, N, S = x.shape
    D_A = w1.shape[1]
    L = w2.shape[1]

    # Lane-dense padding of the small projection dims (multiple of 128 lanes).
    Dp = _round_up(D_A, 128)
    Lp = _round_up(L, 128)
    w1p = jnp.pad(w1, ((0, 0), (0, Dp - D_A)))
    w2p = jnp.pad(w2, ((0, Dp - D_A), (0, Lp - L)))
    w3tp = jnp.pad(w3.T, ((0, 0), (0, Lp - L)))
    b3p = jnp.pad(b3, ((0, 0), (0, Lp - L))).astype(jnp.float32)

    if cast_to is not None:
        xk = x.astype(cast_to)
        w1k, w2k, w3k = (w.astype(cast_to) for w in (w1p, w2p, w3tp))
    else:
        xk, w1k, w2k, w3k = x, w1p, w2p, w3tp

    # Batch-block size: keep a single x block around ~4 MiB so the double-buffered
    # pipeline fits every generation's scoped VMEM (v7x: 64 MiB physical).
    itemsize = jnp.dtype(xk.dtype).itemsize
    x_block_budget = 4 * 1024 * 1024
    max_bt = max(1, x_block_budget // max(1, N * S * itemsize))
    if max_bt >= B:
        Bt = B                       # full-dim block (always legal)
    else:
        Bt = max(8, (max_bt // 8) * 8)   # keep the output block sublane-aligned
    grid_b = pl.cdiv(B, Bt)

    grid_spec = pltpu.PrefetchScalarGridSpec(
        num_scalar_prefetch=0,
        grid=(grid_b,),
        in_specs=[
            pl.BlockSpec((Bt, N, S), lambda b: (b, 0, 0)),
            pl.BlockSpec((S, Dp), lambda b: (0, 0)),
            pl.BlockSpec((Dp, Lp), lambda b: (0, 0)),
            pl.BlockSpec((S, Lp), lambda b: (0, 0)),
            pl.BlockSpec((1, Lp), lambda b: (0, 0)),
        ],
        out_specs=pl.BlockSpec((Bt, Lp), lambda b: (b, 0)),
    )

    out = pl.pallas_call(
        laat_kernel,
        out_shape=jax.ShapeDtypeStruct((B, Lp), jnp.float32),
        grid_spec=grid_spec,
        compiler_params=pltpu.CompilerParams(
            dimension_semantics=("parallel",),
            vmem_limit_bytes=32 * 1024 * 1024,
        ),
    )(xk, w1k, w2k, w3k, b3p)

    return out[:, :L]


def attention_layer_laat_ref(x, w1, w2, w3, b3):
    h = jnp.tanh(jnp.einsum('bns,sd->bnd', x, w1))
    a = jnp.einsum('bnd,dl->bnl', h, w2)
    p = jax.nn.softmax(a, axis=1)                       # softmax over sequence
    wo = jnp.einsum('bnl,bns->bls', p, x)               # att_weights.T @ x
    return jnp.sum(w3[None] * wo, axis=2) + b3


if __name__ == "__main__":
    # Small shapes consistent with the module:
    #   hidden_size=16 -> size=32, d_a=16, n_labels=8, batch=2, seq=8
    B, N = 2, 8
    S = 32      # hidden_size * 2
    D_A = 16
    L = 8       # vocab.label_num

    key = jax.random.PRNGKey(0)
    kx, k1, k2, k3, kb = jax.random.split(key, 5)

    x = jax.random.normal(kx, (B, N, S), dtype=jnp.float32)
    # Deterministic synthetic parameters (normal mean=0.0, std=0.03 like _init_weights)
    w1 = 0.03 * jax.random.normal(k1, (S, D_A), dtype=jnp.float32)
    w2 = 0.03 * jax.random.normal(k2, (D_A, L), dtype=jnp.float32)
    w3 = 0.03 * jax.random.normal(k3, (L, S), dtype=jnp.float32)
    b3 = 0.03 * jax.random.normal(kb, (1, L), dtype=jnp.float32)

    ref = attention_layer_laat_ref(x, w1, w2, w3, b3)

    # f32 matmul path (tolerance covers the EUP approx reciprocal in the softmax).
    logits = attention_layer_laat(x, w1, w2, w3, b3)
    jax.block_until_ready(logits)
    assert logits.shape == (B, L)
    assert jnp.allclose(logits, ref, atol=1e-3, rtol=1e-3), "f32 mismatch vs reference"

    # bf16 matmul-operand path (v6e/v7x MXU friendly); f32 accumulation + f32 softmax.
    logits_bf16 = attention_layer_laat(x, w1, w2, w3, b3, cast_to=jnp.bfloat16)
    jax.block_until_ready(logits_bf16)
    assert jnp.allclose(logits_bf16, ref, atol=5e-2, rtol=5e-2), "bf16 mismatch vs reference"

    print("KERNEL_OK")
</pallas_src>

<mosaic_0001>
module attributes {stable_mosaic.version = 11 : i64} {
  func.func @laat_kernel(%arg0: i32, %arg1: memref<2x8x32xf32, #tpu.memory_space<vmem>>, %arg2: memref<32x128xf32, #tpu.memory_space<vmem>>, %arg3: memref<128x128xf32, #tpu.memory_space<vmem>>, %arg4: memref<32x128xf32, #tpu.memory_space<vmem>>, %arg5: memref<1x128xf32, #tpu.memory_space<vmem>>, %arg6: memref<2x128xf32, #tpu.memory_space<vmem>>) attributes {dimension_semantics = [#tpu.dimension_semantics<parallel>], iteration_bounds = array<i64: 1>, scalar_prefetch = 0 : i64, scratch_operands = 0 : i64, tpu.core_type = #tpu.core_type<tc>, window_params = [{transform_indices = @transform_0, window_bounds = array<i64: 2, 8, 32>}, {pipeline_mode = #tpu.pipeline_mode<synchronous>, transform_indices = @transform_1, window_bounds = array<i64: 32, 128>}, {pipeline_mode = #tpu.pipeline_mode<synchronous>, transform_indices = @transform_2, window_bounds = array<i64: 128, 128>}, {pipeline_mode = #tpu.pipeline_mode<synchronous>, transform_indices = @transform_3, window_bounds = array<i64: 32, 128>}, {pipeline_mode = #tpu.pipeline_mode<synchronous>, transform_indices = @transform_4, window_bounds = array<i64: 1, 128>}, {transform_indices = @transform_5, window_bounds = array<i64: 2, 128>}]} {
    %c0 = arith.constant 0 : index
    %c0_0 = arith.constant 0 : index
    %c0_1 = arith.constant 0 : index
    %0 = vector.load %arg1[%c0, %c0_0, %c0_1] : memref<2x8x32xf32, #tpu.memory_space<vmem>>, vector<2x8x32xf32>
    %1 = vector.shape_cast %0 : vector<2x8x32xf32> to vector<16x32xf32>
    %c0_2 = arith.constant 0 : index
    %c0_3 = arith.constant 0 : index
    %2 = vector.load %arg2[%c0_2, %c0_3] : memref<32x128xf32, #tpu.memory_space<vmem>>, vector<32x128xf32>
    %cst = arith.constant dense<0.000000e+00> : vector<16x128xf32>
    %3 = tpu.matmul %1, %2, %cst {dimension_numbers = #tpu.dot_dimension_numbers<[1], [0], [0], [1], [0, 0, 1, 1], [], []>} : vector<16x32xf32>, vector<32x128xf32>, vector<16x128xf32> -> vector<16x128xf32>
    %4 = math.tanh %3 : vector<16x128xf32>
    %c0_4 = arith.constant 0 : index
    %c0_5 = arith.constant 0 : index
    %5 = vector.load %arg3[%c0_4, %c0_5] : memref<128x128xf32, #tpu.memory_space<vmem>>, vector<128x128xf32>
    %cst_6 = arith.constant dense<0.000000e+00> : vector<16x128xf32>
    %6 = tpu.matmul %4, %5, %cst_6 {dimension_numbers = #tpu.dot_dimension_numbers<[1], [0], [0], [1], [0, 0, 1, 1], [], []>} : vector<16x128xf32>, vector<128x128xf32>, vector<16x128xf32> -> vector<16x128xf32>
    %c0_7 = arith.constant 0 : index
    %c0_8 = arith.constant 0 : index
    %7 = vector.load %arg4[%c0_7, %c0_8] : memref<32x128xf32, #tpu.memory_space<vmem>>, vector<32x128xf32>
    %cst_9 = arith.constant dense<0.000000e+00> : vector<16x128xf32>
    %8 = tpu.matmul %1, %7, %cst_9 {dimension_numbers = #tpu.dot_dimension_numbers<[1], [0], [0], [1], [0, 0, 1, 1], [], []>} : vector<16x32xf32>, vector<32x128xf32>, vector<16x128xf32> -> vector<16x128xf32>
    %9 = vector.shape_cast %6 : vector<16x128xf32> to vector<2x8x128xf32>
    %cst_10 = arith.constant dense<0xFF800000> : vector<2x128xf32>
    %10 = vector.multi_reduction <maximumf>, %9, %cst_10 [1] : vector<2x8x128xf32> to vector<2x128xf32>
    %11 = vector.shape_cast %10 : vector<2x128xf32> to vector<2x1x128xf32>
    %12 = vector.broadcast %11 : vector<2x1x128xf32> to vector<2x8x128xf32>
    %13 = arith.subf %9, %12 : vector<2x8x128xf32>
    %14 = math.exp %13 : vector<2x8x128xf32>
    %cst_11 = arith.constant dense<0.000000e+00> : vector<2x128xf32>
    %15 = vector.multi_reduction <add>, %14, %cst_11 [1] : vector<2x8x128xf32> to vector<2x128xf32>
    %16 = vector.shape_cast %15 : vector<2x128xf32> to vector<2x1x128xf32>
    %17 = tpu.reciprocal %16 {approx = true} : vector<2x1x128xf32> -> vector<2x1x128xf32>
    %18 = vector.broadcast %17 : vector<2x1x128xf32> to vector<2x8x128xf32>
    %19 = arith.mulf %14, %18 : vector<2x8x128xf32>
    %20 = vector.shape_cast %8 : vector<16x128xf32> to vector<2x8x128xf32>
    %21 = arith.mulf %19, %20 : vector<2x8x128xf32>
    %cst_12 = arith.constant dense<0.000000e+00> : vector<2x128xf32>
    %22 = vector.multi_reduction <add>, %21, %cst_12 [1] : vector<2x8x128xf32> to vector<2x128xf32>
    %c0_13 = arith.constant 0 : index
    %c0_14 = arith.constant 0 : index
    %23 = vector.load %arg5[%c0_13, %c0_14] : memref<1x128xf32, #tpu.memory_space<vmem>>, vector<1x128xf32>
    %24 = vector.broadcast %23 : vector<1x128xf32> to vector<2x128xf32>
    %25 = arith.addf %22, %24 : vector<2x128xf32>
    %c0_15 = arith.constant 0 : index
    %c0_16 = arith.constant 0 : index
    %26 = vector.load %arg6[%c0_15, %c0_16] : memref<2x128xf32, #tpu.memory_space<vmem>>, vector<2x128xf32>
    tpu.vector_store %arg6[%c0_15, %c0_16], %25 {strides = array<i32>} : memref<2x128xf32, #tpu.memory_space<vmem>>, vector<2x128xf32>,
    return
  }
  func.func @transform_0(%arg0: i32) -> (i32, i32, i32) {
    %c0_i32 = arith.constant 0 : i32
    %c0_i32_0 = arith.constant 0 : i32
    %c0_i32_1 = arith.constant 0 : i32
    return %arg0, %c0_i32, %c0_i32_0 : i32, i32, i32
  }
  func.func @transform_1(%arg0: i32) -> (i32, i32) {
    %c0_i32 = arith.constant 0 : i32
    %c0_i32_0 = arith.constant 0 : i32
    %c0_i32_1 = arith.constant 0 : i32
    return %c0_i32, %c0_i32_0 : i32, i32
  }
  func.func @transform_2(%arg0: i32) -> (i32, i32) {
    %c0_i32 = arith.constant 0 : i32
    %c0_i32_0 = arith.constant 0 : i32
    %c0_i32_1 = arith.constant 0 : i32
    return %c0_i32, %c0_i32_0 : i32, i32
  }
  func.func @transform_3(%arg0: i32) -> (i32, i32) {
    %c0_i32 = arith.constant 0 : i32
    %c0_i32_0 = arith.constant 0 : i32
    %c0_i32_1 = arith.constant 0 : i32
    return %c0_i32, %c0_i32_0 : i32, i32
  }
  func.func @transform_4(%arg0: i32) -> (i32, i32) {
    %c0_i32 = arith.constant 0 : i32
    %c0_i32_0 = arith.constant 0 : i32
    %c0_i32_1 = arith.constant 0 : i32
    return %c0_i32, %c0_i32_0 : i32, i32
  }
  func.func @transform_5(%arg0: i32) -> (i32, i32) {
    %c0_i32 = arith.constant 0 : i32
    %c0_i32_0 = arith.constant 0 : i32
    return %arg0, %c0_i32 : i32, i32
  }
}

</mosaic_0001>

<llo_original>
// kernel: tpu_custom_call.1
$region0: #{tpu_custom_call.1}
  #allocation0 [shape = 'u32[]', space=smem, size = 0x4, offset = 0x4, fixed_abs, tag = 'smem constant byte address 0x4 - core index']
  #allocation1 [shape = 'u32[144,128]{1,0:T(1,128)}', space=vmem, size = 0x12000, scoped, tag = 'internal scratch']
  %s0 = inlined_call_operand.hbm [shape: f32[2,8,32], index: 0, kind: input, shape index: {}]
  %s1 = inlined_call_operand.hbm [shape: f32[32,128], index: 1, kind: input, shape index: {}]
  %s2 = inlined_call_operand.hbm [shape: f32[128,128], index: 2, kind: input, shape index: {}]
  %s3 = inlined_call_operand.hbm [shape: f32[32,128], index: 3, kind: input, shape index: {}]
  %s4 = inlined_call_operand.vmem [shape: f32[1,128], index: 4, kind: input, shape index: {}]
  %s5 = inlined_call_operand.hbm [shape: f32[2,128], index: 5, kind: output, shape index: {}]
  %s6 = sld [smem:[#allocation0]]
  $region46: #{tpu_custom_call.1} parent=0
    _
  %s8 = ssub.s32 1, %s6
  %s9 = scalar_select 0, %s8, %s6
  $region1: #{tpu_custom_call.1} parent=0
    #allocation2 [shape = 'u8[8192]{0}', space=vmem, size = 0x2000, scoped, tag = 'input window, operand 0, single buffered']
    #allocation3 [shape = 's32[1]{0}', space=sflag, size = 0x4, scoped, tag = 'scoped memory for tpu_custom_call.1']
    #allocation4 [shape = 's32[1]{0}', space=sflag, size = 0x4, scoped, tag = 'scoped memory for tpu_custom_call.1']
    #allocation5 [shape = 'u8[16384]{0}', space=vmem, size = 0x4000, scoped, tag = 'input window, operand 1, single buffered']
    #allocation6 [shape = 's32[1]{0}', space=sflag, size = 0x4, scoped, tag = 'scoped memory for tpu_custom_call.1']
    #allocation7 [shape = 'u8[65536]{0}', space=vmem, size = 0x10000, scoped, tag = 'input window, operand 2, single buffered']
    #allocation8 [shape = 'u8[16384]{0}', space=vmem, size = 0x4000, scoped, tag = 'input window, operand 3, single buffered']
    #allocation9 [shape = 's32[1]{0}', space=sflag, size = 0x4, scoped, tag = 'scoped memory for tpu_custom_call.1']
    #allocation10 [shape = 'u8[1024]{0}', space=vmem, size = 0x400, scoped, tag = 'output window, operand 0, single buffered']
    %10 = vsyncpa [#allocation3], 0
    %11 = vsyncpa [#allocation6], 0
    %12 = vsyncpa [#allocation9], 0
    %13 = vsyncpa [#allocation4], 0
    // Predicated region
    $region2: #{tpu_custom_call.1} parent=1 // pred_check
      _
    $region3: #{tpu_custom_call.1} parent=1 // pred_check_branch
      %15 = sbr.rel (0) target = $region5
    $region4: #{tpu_custom_call.1} parent=1 // pred_region
      %s17 = ssub.s32 256, 256
      %18 = vsyncadd [#allocation3], %s17
      %s19 = sshll.u32 [#allocation2], 4
      %s20 = int_to_ptr.vmem [resolvable:$true] %s19
      %25 = dma.hbm_to_vmem [thread:$0]  %s0, 256, %s20, [#allocation3], 128, 128, 8
    $region5: #{tpu_custom_call.1} parent=1 // pred_fallthru
      _
    // Predicated region
    $region6: #{tpu_custom_call.1} parent=1 // pred_check
      _
    $region7: #{tpu_custom_call.1} parent=1 // pred_check_branch
      %27 = sbr.rel (0) target = $region9
    $region8: #{tpu_custom_call.1} parent=1 // pred_region
      %s29 = ssub.s32 512, 512
      %30 = vsyncadd [#allocation6], %s29
      %s31 = sshll.u32 [#allocation5], 4
      %s32 = int_to_ptr.vmem [resolvable:$true] %s31
      %37 = dma.hbm_to_vmem [thread:$0]  %s1, 512, %s32, [#allocation6], 128, 128, 8
    $region9: #{tpu_custom_call.1} parent=1 // pred_fallthru
      _
    // Predicated region
    $region10: #{tpu_custom_call.1} parent=1 // pred_check
      _
    $region11: #{tpu_custom_call.1} parent=1 // pred_check_branch
      %39 = sbr.rel (0) target = $region13
    $region12: #{tpu_custom_call.1} parent=1 // pred_region
      %s41 = ssub.s32 2048, 2048
      %42 = vsyncadd [#allocation6], %s41
      %s43 = sshll.u32 [#allocation7], 4
      %s44 = int_to_ptr.vmem [resolvable:$true] %s43
      %49 = dma.hbm_to_vmem [thread:$0]  %s2, 2048, %s44, [#allocation6], 128, 128, 8
    $region13: #{tpu_custom_call.1} parent=1 // pred_fallthru
      _
    // Predicated region
    $region14: #{tpu_custom_call.1} parent=1 // pred_check
      _
    $region15: #{tpu_custom_call.1} parent=1 // pred_check_branch
      %51 = sbr.rel (0) target = $region17
    $region16: #{tpu_custom_call.1} parent=1 // pred_region
      %s53 = ssub.s32 512, 512
      %54 = vsyncadd [#allocation9], %s53
      %s55 = sshll.u32 [#allocation8], 4
      %s56 = int_to_ptr.vmem [resolvable:$true] %s55
      %61 = dma.hbm_to_vmem [thread:$0]  %s3, 512, %s56, [#allocation9], 128, 128, 8
    $region17: #{tpu_custom_call.1} parent=1 // pred_fallthru
      _
    // Predicated region
    $region18: #{tpu_custom_call.1} parent=1 // pred_check
      _
    $region19: #{tpu_custom_call.1} parent=1 // pred_check_branch
      %63 = sbr.rel (0) target = $region21
    $region20: #{tpu_custom_call.1} parent=1 // pred_region
      _
    $region21: #{tpu_custom_call.1} parent=1 // pred_fallthru
      _
    // Predicated region
    $region22: #{tpu_custom_call.1} parent=1 // pred_check
      _
    $region23: #{tpu_custom_call.1} parent=1 // pred_check_branch
      %65 = sbr.rel (0) target = $region25
    $region24: #{tpu_custom_call.1} parent=1 // pred_region
      %66 = dma.done [#allocation3], 256
    $region25: #{tpu_custom_call.1} parent=1 // pred_fallthru
      _
    // Predicated region
    $region26: #{tpu_custom_call.1} parent=1 // pred_check
      _
    $region27: #{tpu_custom_call.1} parent=1 // pred_check_branch
      %68 = sbr.rel (0) target = $region29
    $region28: #{tpu_custom_call.1} parent=1 // pred_region
      %69 = dma.done [#allocation6], 512
    $region29: #{tpu_custom_call.1} parent=1 // pred_fallthru
      _
    // Predicated region
    $region30: #{tpu_custom_call.1} parent=1 // pred_check
      _
    $region31: #{tpu_custom_call.1} parent=1 // pred_check_branch
      %71 = sbr.rel (0) target = $region33
    $region32: #{tpu_custom_call.1} parent=1 // pred_region
      %72 = dma.done [#allocation6], 2048
    $region33: #{tpu_custom_call.1} parent=1 // pred_fallthru
      _
    // Predicated region
    $region34: #{tpu_custom_call.1} parent=1 // pred_check
      _
    $region35: #{tpu_custom_call.1} parent=1 // pred_check_branch
      %74 = sbr.rel (0) target = $region37
    $region36: #{tpu_custom_call.1} parent=1 // pred_region
      %75 = dma.done [#allocation9], 512
    $region37: #{tpu_custom_call.1} parent=1 // pred_fallthru
      _
    %v76 = vld [vmem:[#allocation2] sm:$0xff]
    %v77 = vld [vmem:[#allocation2 + $0x8] sm:$0xff]
    %v78 = vld [vmem:[#allocation5] sm:$0xff]
    %v79 = vld [vmem:[#allocation5 + $0x8] sm:$0xff]
    %v80 = vld [vmem:[#allocation5 + $0x10] sm:$0xff]
    %v81 = vld [vmem:[#allocation5 + $0x18] sm:$0xff]
    %vm82 = vcmask 261120
    %v84 = vsel %vm82, %v76, 0
    %v87 = vsel %vm82, %v77, 0
    %89 = vmatprep.subr.mxu0 0.0
    %90 = vmatpush1.msra.mxu0 %v78
    %91 = vmatprep.subr.mxu0 0.0
    %92 = vmatpush1.msra.mxu0 %v79
    %93 = vmatprep.subr.mxu0 0.0
    %94 = vmatpush1.msra.mxu0 %v80
    %95 = vmatprep.subr.mxu0 0.0
    %96 = vmatpush1.msra.mxu0 %v81
    %97 = vmatprep.subr.mxu0 0.0
    %98 = vmatpush1.msra.mxu0 0.0
    %99 = vmatprep.subr.mxu0 0.0
    %100 = vmatpush1.msra.mxu0 0.0
    %101 = vmatprep.subr.mxu0 0.0
    %102 = vmatpush1.msra.mxu0 0.0
    %103 = vmatprep.subr.mxu0 0.0
    %104 = vmatpush1.msra.mxu0 0.0
    %105 = vmatprep.subr.mxu0 0.0
    %106 = vmatpush1.msra.mxu0 0.0
    %107 = vmatprep.subr.mxu0 0.0
    %108 = vmatpush1.msra.mxu0 0.0
    %109 = vmatprep.subr.mxu0 0.0
    %110 = vmatpush1.msra.mxu0 0.0
    %111 = vmatprep.subr.mxu0 0.0
    %112 = vmatpush1.msra.mxu0 0.0
    %113 = vmatprep.subr.mxu0 0.0
    %114 = vmatpush1.msra.mxu0 0.0
    %115 = vmatprep.subr.mxu0 0.0
    %116 = vmatpush1.msra.mxu0 0.0
    %117 = vmatprep.subr.mxu0 0.0
    %118 = vmatpush1.msra.mxu0 0.0
    %119 = vmatprep.subr.mxu0 0.0
    %120 = vmatpush1.msra.mxu0 0.0
    %121 = vmatprep.subr.mxu0 0.0
    %122 = vmatpush1.msra.mxu0 0.0
    %123 = vmatprep.subr.mxu0 0.0
    %124 = vmatpush1.msra.mxu0 0.0
    %125 = vmatprep.subr.mxu0 0.0
    %126 = vmatpush1.msra.mxu0 0.0
    %127 = vmatprep.subr.mxu0 0.0
    %128 = vmatpush1.msra.mxu0 0.0
    %129 = vmatprep.subr.mxu0 0.0
    %130 = vmatpush1.msra.mxu0 0.0
    %131 = vmatprep.subr.mxu0 0.0
    %132 = vmatpush1.msra.mxu0 0.0
    %133 = vmatprep.subr.mxu0 0.0
    %134 = vmatpush1.msra.mxu0 0.0
    %135 = vmatprep.subr.mxu0 0.0
    %136 = vmatpush1.msra.mxu0 0.0
    %137 = vmatprep.subr.mxu0 0.0
    %138 = vmatpush1.msra.mxu0 0.0
    %139 = vmatprep.subr.mxu0 0.0
    %140 = vmatpush1.msra.mxu0 0.0
    %141 = vmatprep.subr.mxu0 0.0
    %142 = vmatpush1.msra.mxu0 0.0
    %143 = vmatprep.subr.mxu0 0.0
    %144 = vmatpush1.msra.mxu0 0.0
    %145 = vmatprep.subr.mxu0 0.0
    %146 = vmatpush1.msra.mxu0 0.0
    %147 = vmatprep.subr.mxu0 0.0
    %148 = vmatpush1.msra.mxu0 0.0
    %149 = vmatprep.subr.mxu0 0.0
    %150 = vmatpush1.msra.mxu0 0.0
    %151 = vmatprep.subr.mxu0 0.0
    %152 = vmatpush1.msra.mxu0 0.0
    %153 = vmatprep.mubr.f32.mxu0 0.0
    %154 = vmatmul.mubr.f32.gmra.mrb[0].mxu0 %v84
    %v155 = vpop.f32.mrb[0].mxu0
    %v156 = vadd.f32 0.0, %v155
    %v157 = vpop.f32.mrb[0].mxu0
    %158 = vmatprep.mubr.f32.mxu0 0.0
    %159 = vmatmul.mubr.f32.gmra.mrb[0].mxu0 %v87
    %v160 = vpop.f32.mrb[0].mxu0
    %v161 = vadd.f32 0.0, %v160
    %v162 = vpop.f32.mrb[0].mxu0
    %163 = vdwg.mxu0
    %v164 = vtanh.pop %v156
    %v165 = vtanh.pop %v161
    %v166 = vld [vmem:[#allocation7] sm:$0xff]
    %v167 = vld [vmem:[#allocation7 + $0x8] sm:$0xff]
    %v168 = vld [vmem:[#allocation7 + $0x10] sm:$0xff]
    %v169 = vld [vmem:[#allocation7 + $0x18] sm:$0xff]
    %v170 = vld [vmem:[#allocation7 + $0x20] sm:$0xff]
    %v171 = vld [vmem:[#allocation7 + $0x28] sm:$0xff]
    %v172 = vld [vmem:[#allocation7 + $0x30] sm:$0xff]
    %v173 = vld [vmem:[#allocation7 + $0x38] sm:$0xff]
    %v174 = vld [vmem:[#allocation7 + $0x40] sm:$0xff]
    %v175 = vld [vmem:[#allocation7 + $0x48] sm:$0xff]
    %v176 = vld [vmem:[#allocation7 + $0x50] sm:$0xff]
    %v177 = vld [vmem:[#allocation7 + $0x58] sm:$0xff]
    %v178 = vld [vmem:[#allocation7 + $0x60] sm:$0xff]
    %v179 = vld [vmem:[#allocation7 + $0x68] sm:$0xff]
    %v180 = vld [vmem:[#allocation7 + $0x70] sm:$0xff]
    %v181 = vld [vmem:[#allocation7 + $0x78] sm:$0xff]
    %182 = vmatprep.subr.mxu0 0.0
    %183 = vmatpush1.msra.mxu0 %v166
    %184 = vmatprep.subr.mxu0 0.0
    %185 = vmatpush1.msra.mxu0 %v167
    %186 = vmatprep.subr.mxu0 0.0
    %187 = vmatpush1.msra.mxu0 %v168
    %188 = vmatprep.subr.mxu0 0.0
    %189 = vmatpush1.msra.mxu0 %v169
    %190 = vmatprep.subr.mxu0 0.0
    %191 = vmatpush1.msra.mxu0 %v170
    %192 = vmatprep.subr.mxu0 0.0
    %193 = vmatpush1.msra.mxu0 %v171
    %194 = vmatprep.subr.mxu0 0.0
    %195 = vmatpush1.msra.mxu0 %v172
    %196 = vmatprep.subr.mxu0 0.0
    %197 = vmatpush1.msra.mxu0 %v173
    %198 = vmatprep.subr.mxu0 0.0
    %199 = vmatpush1.msra.mxu0 %v174
    %200 = vmatprep.subr.mxu0 0.0
    %201 = vmatpush1.msra.mxu0 %v175
    %202 = vmatprep.subr.mxu0 0.0
    %203 = vmatpush1.msra.mxu0 %v176
    %204 = vmatprep.subr.mxu0 0.0
    %205 = vmatpush1.msra.mxu0 %v177
    %206 = vmatprep.subr.mxu0 0.0
    %207 = vmatpush1.msra.mxu0 %v178
    %208 = vmatprep.subr.mxu0 0.0
    %209 = vmatpush1.msra.mxu0 %v179
    %210 = vmatprep.subr.mxu0 0.0
    %211 = vmatpush1.msra.mxu0 %v180
    %212 = vmatprep.subr.mxu0 0.0
    %213 = vmatpush1.msra.mxu0 %v181
    %214 = vmatprep.subr.mxu0 0.0
    %215 = vmatpush1.msra.mxu0 0.0
    %216 = vmatprep.subr.mxu0 0.0
    %217 = vmatpush1.msra.mxu0 0.0
    %218 = vmatprep.subr.mxu0 0.0
    %219 = vmatpush1.msra.mxu0 0.0
    %220 = vmatprep.subr.mxu0 0.0
    %221 = vmatpush1.msra.mxu0 0.0
    %222 = vmatprep.subr.mxu0 0.0
    %223 = vmatpush1.msra.mxu0 0.0
    %224 = vmatprep.subr.mxu0 0.0
    %225 = vmatpush1.msra.mxu0 0.0
    %226 = vmatprep.subr.mxu0 0.0
    %227 = vmatpush1.msra.mxu0 0.0
    %228 = vmatprep.subr.mxu0 0.0
    %229 = vmatpush1.msra.mxu0 0.0
    %230 = vmatprep.subr.mxu0 0.0
    %231 = vmatpush1.msra.mxu0 0.0
    %232 = vmatprep.subr.mxu0 0.0
    %233 = vmatpush1.msra.mxu0 0.0
    %234 = vmatprep.subr.mxu0 0.0
    %235 = vmatpush1.msra.mxu0 0.0
    %236 = vmatprep.subr.mxu0 0.0
    %237 = vmatpush1.msra.mxu0 0.0
    %238 = vmatprep.subr.mxu0 0.0
    %239 = vmatpush1.msra.mxu0 0.0
    %240 = vmatprep.subr.mxu0 0.0
    %241 = vmatpush1.msra.mxu0 0.0
    %242 = vmatprep.subr.mxu0 0.0
    %243 = vmatpush1.msra.mxu0 0.0
    %244 = vmatprep.subr.mxu0 0.0
    %245 = vmatpush1.msra.mxu0 0.0
    %246 = vmatprep.mubr.f32.mxu0 0.0
    %247 = vmatmul.mubr.f32.gmra.mrb[0].mxu0 %v164
    %v248 = vpop.f32.mrb[0].mxu0
    %v249 = vadd.f32 0.0, %v248
    %v250 = vpop.f32.mrb[0].mxu0
    %251 = vmatprep.mubr.f32.mxu0 0.0
    %252 = vmatmul.mubr.f32.gmra.mrb[0].mxu0 %v165
    %v253 = vpop.f32.mrb[0].mxu0
    %v254 = vadd.f32 0.0, %v253
    %v255 = vpop.f32.mrb[0].mxu0
    %256 = vdwg.mxu0
    %v257 = vld [vmem:[#allocation8] sm:$0xff]
    %v258 = vld [vmem:[#allocation8 + $0x8] sm:$0xff]
    %v259 = vld [vmem:[#allocation8 + $0x10] sm:$0xff]
    %v260 = vld [vmem:[#allocation8 + $0x18] sm:$0xff]
    %261 = vmatprep.subr.mxu0 0.0
    %262 = vmatpush1.msra.mxu0 %v257
    %263 = vmatprep.subr.mxu0 0.0
    %264 = vmatpush1.msra.mxu0 %v258
    %265 = vmatprep.subr.mxu0 0.0
    %266 = vmatpush1.msra.mxu0 %v259
    %267 = vmatprep.subr.mxu0 0.0
    %268 = vmatpush1.msra.mxu0 %v260
    %269 = vmatprep.subr.mxu0 0.0
    %270 = vmatpush1.msra.mxu0 0.0
    %271 = vmatprep.subr.mxu0 0.0
    %272 = vmatpush1.msra.mxu0 0.0
    %273 = vmatprep.subr.mxu0 0.0
    %274 = vmatpush1.msra.mxu0 0.0
    %275 = vmatprep.subr.mxu0 0.0
    %276 = vmatpush1.msra.mxu0 0.0
    %277 = vmatprep.subr.mxu0 0.0
    %278 = vmatpush1.msra.mxu0 0.0
    %279 = vmatprep.subr.mxu0 0.0
    %280 = vmatpush1.msra.mxu0 0.0
    %281 = vmatprep.subr.mxu0 0.0
    %282 = vmatpush1.msra.mxu0 0.0
    %283 = vmatprep.subr.mxu0 0.0
    %284 = vmatpush1.msra.mxu0 0.0
    %285 = vmatprep.subr.mxu0 0.0
    %286 = vmatpush1.msra.mxu0 0.0
    %287 = vmatprep.subr.mxu0 0.0
    %288 = vmatpush1.msra.mxu0 0.0
    %289 = vmatprep.subr.mxu0 0.0
    %290 = vmatpush1.msra.mxu0 0.0
    %291 = vmatprep.subr.mxu0 0.0
    %292 = vmatpush1.msra.mxu0 0.0
    %293 = vmatprep.subr.mxu0 0.0
    %294 = vmatpush1.msra.mxu0 0.0
    %295 = vmatprep.subr.mxu0 0.0
    %296 = vmatpush1.msra.mxu0 0.0
    %297 = vmatprep.subr.mxu0 0.0
    %298 = vmatpush1.msra.mxu0 0.0
    %299 = vmatprep.subr.mxu0 0.0
    %300 = vmatpush1.msra.mxu0 0.0
    %301 = vmatprep.subr.mxu0 0.0
    %302 = vmatpush1.msra.mxu0 0.0
    %303 = vmatprep.subr.mxu0 0.0
    %304 = vmatpush1.msra.mxu0 0.0
    %305 = vmatprep.subr.mxu0 0.0
    %306 = vmatpush1.msra.mxu0 0.0
    %307 = vmatprep.subr.mxu0 0.0
    %308 = vmatpush1.msra.mxu0 0.0
    %309 = vmatprep.subr.mxu0 0.0
    %310 = vmatpush1.msra.mxu0 0.0
    %311 = vmatprep.subr.mxu0 0.0
    %312 = vmatpush1.msra.mxu0 0.0
    %313 = vmatprep.subr.mxu0 0.0
    %314 = vmatpush1.msra.mxu0 0.0
    %315 = vmatprep.subr.mxu0 0.0
    %316 = vmatpush1.msra.mxu0 0.0
    %317 = vmatprep.subr.mxu0 0.0
    %318 = vmatpush1.msra.mxu0 0.0
    %319 = vmatprep.subr.mxu0 0.0
    %320 = vmatpush1.msra.mxu0 0.0
    %321 = vmatprep.subr.mxu0 0.0
    %322 = vmatpush1.msra.mxu0 0.0
    %323 = vmatprep.subr.mxu0 0.0
    %324 = vmatpush1.msra.mxu0 0.0
    %325 = vmatprep.mubr.f32.mxu0 0.0
    %326 = vmatmul.mubr.f32.gmra.mrb[0].mxu0 %v84
    %v327 = vpop.f32.mrb[0].mxu0
    %v328 = vadd.f32 0.0, %v327
    %v329 = vpop.f32.mrb[0].mxu0
    %330 = vmatprep.mubr.f32.mxu0 0.0
    %331 = vmatmul.mubr.f32.gmra.mrb[0].mxu0 %v87
    %v332 = vpop.f32.mrb[0].mxu0
    %v333 = vadd.f32 0.0, %v332
    %v334 = vpop.f32.mrb[0].mxu0
    %335 = vdwg.mxu0
    %v336 = vrot.slane %v249, 4
    %v337 = vmax.f32 %v249, %v336
    %v338 = vrot.slane %v337, 2
    %v339 = vmax.f32 %v337, %v338
    %v340 = vrot.slane %v339, 1
    %v341 = vmax.f32 %v339, %v340
    %v342 = vrot.slane %v254, 4
    %v343 = vmax.f32 %v254, %v342
    %v344 = vrot.slane %v343, 2
    %v345 = vmax.f32 %v343, %v344
    %v346 = vrot.slane %v345, 1
    %v347 = vmax.f32 %v345, %v346
    %v348 = vsub.f32 %v249, %v341
    %v349 = vsub.f32 %v254, %v347
    %v350 = vmul.f32 %v348, 1.442695
    %v351 = vpow.pop %v350
    %v352 = vmul.f32 %v349, 1.442695
    %v353 = vpow.pop %v352
    %v354 = vrot.slane %v351, 4
    %v355 = vadd.f32 %v351, %v354
    %v356 = vrot.slane %v355, 2
    %v357 = vadd.f32 %v355, %v356
    %v358 = vrot.slane %v357, 1
    %v359 = vadd.f32 %v357, %v358
    %v360 = vrot.slane %v353, 4
    %v361 = vadd.f32 %v353, %v360
    %v362 = vrot.slane %v361, 2
    %v363 = vadd.f32 %v361, %v362
    %v364 = vrot.slane %v363, 1
    %v365 = vadd.f32 %v363, %v364
    %v366 = vrcp.pop %v359
    %v367 = vrcp.pop %v365
    %v368 = vmul.f32 %v351, %v366
    %v369 = vmul.f32 %v353, %v367
    %v370 = vmul.f32 %v368, %v328
    %v371 = vmul.f32 %v369, %v333
    %v372 = vrot.slane %v370, 4
    %v373 = vadd.f32 %v370, %v372
    %v374 = vrot.slane %v373, 2
    %v375 = vadd.f32 %v373, %v374
    %v376 = vrot.slane %v375, 1
    %v377 = vadd.f32 %v375, %v376
    %v378 = vrot.slane %v371, 4
    %v379 = vadd.f32 %v371, %v378
    %v380 = vrot.slane %v379, 2
    %v381 = vadd.f32 %v379, %v380
    %v382 = vrot.slane %v381, 1
    %v383 = vadd.f32 %v381, %v382
    %v384 = vld [vmem:[%s4] sm:$0x1]
    %v386 = vlaneseq
    %v387 = vshrl.u32 %v386, 7
    %v388 = vsub.s32 0, %v387
    %v389 = vrot.slane %v384, %v388
    %v391 = vadd.f32 %v377, %v389
    %v392 = vadd.f32 %v383, %v389
    %v395 = vrot.slane %v392, 7
    %vm396 = vcmask 1041409
    %v397 = vsel %vm396, %v395, %v391
    %399 = vst [vmem:[#allocation10] sm:$0x3] %v397
    // Predicated region
    $region38: #{tpu_custom_call.1} parent=1 // pred_check
      _
    $region39: #{tpu_custom_call.1} parent=1 // pred_check_branch
      %401 = sbr.rel (0) target = $region41
    $region40: #{tpu_custom_call.1} parent=1 // pred_region
      %s403 = ssub.s32 32, 32
      %404 = vsyncadd [#allocation4], %s403
      %s406 = sshll.u32 [#allocation10], 4
      %s407 = int_to_ptr.vmem [resolvable:$true] %s406
      %409 = dma.vmem_to_hbm [thread:$0]  %s407, 32, %s5, [#allocation4]
    $region41: #{tpu_custom_call.1} parent=1 // pred_fallthru
      _
    // Predicated region
    $region42: #{tpu_custom_call.1} parent=1 // pred_check
      _
    $region43: #{tpu_custom_call.1} parent=1 // pred_check_branch
      %411 = sbr.rel (0) target = $region45
    $region44: #{tpu_custom_call.1} parent=1 // pred_region
      %412 = dma.done [#allocation4], 32
    $region45: #{tpu_custom_call.1} parent=1 // pred_fallthru
      _
    %413 = vsyncpa [#allocation3], 1
    %414 = vsyncpa [#allocation6], 1
    %415 = vsyncpa [#allocation9], 1
    %416 = vsyncpa [#allocation4], 1

</llo_original>
